<compile_context>
chip_gen: v7x
topology: tpu7x:2x2x1
jax: 0.10.0
libtpu: 0.0.40
codegen_flags: <defaults>
</compile_context>

<pallas_src>
import jax
import jax.numpy as jnp
from jax.experimental import pallas as pl
from jax.experimental.pallas import tpu as pltpu


def _round_up(x, m):
    return ((x + m - 1) // m) * m


# ---------------------------------------------------------------------------
# Kernels
# ---------------------------------------------------------------------------

def _reparam_rsample_kernel(x_ref, w_ref, b_ref, eps_ref, out_ref):
    # x: (tb, dim_in) bf16, w: (dim_in, 2*dout) bf16, b: (1, 2*dout) f32,
    # eps: (tb, dout) f32, out: (tb, 3*dout) f32  = [mean | logvar | z]
    ml = jnp.dot(x_ref[...], w_ref[...],
                 preferred_element_type=jnp.float32) + b_ref[...]
    dout = eps_ref.shape[-1]
    mean = ml[:, :dout]
    logvar = ml[:, dout:]
    z = mean + eps_ref[...] * jnp.exp(0.5 * logvar)
    out_ref[...] = jnp.concatenate([ml, z], axis=-1).astype(out_ref.dtype)


def _reparam_eval_kernel(x_ref, w_ref, b_ref, out_ref):
    # eval path: no eps stream, no exp, no z writeback
    ml = jnp.dot(x_ref[...], w_ref[...],
                 preferred_element_type=jnp.float32) + b_ref[...]
    out_ref[...] = ml.astype(out_ref.dtype)


# ---------------------------------------------------------------------------
# Parameter packing (do ONCE at init, not per forward call)
# ---------------------------------------------------------------------------

def prepare_reparam_params(w_mean, b_mean, w_logvar, b_logvar,
                           compute_dtype=jnp.bfloat16):
    """w_*: [dim_out, dim_in] (PyTorch layout), b_*: [dim_out].
    Returns (w_fused [dim_in, 2*dim_out] compute_dtype, b_fused [1, 2*dim_out] f32)."""
    wm = jnp.asarray(w_mean, jnp.float32).T      # [dim_in, dim_out]
    wl = jnp.asarray(w_logvar, jnp.float32).T    # [dim_in, dim_out]
    w_fused = jnp.concatenate([wm, wl], axis=1).astype(compute_dtype)
    b_fused = jnp.concatenate(
        [jnp.asarray(b_mean, jnp.float32), jnp.asarray(b_logvar, jnp.float32)]
    ).reshape(1, -1)
    return w_fused, b_fused


# ---------------------------------------------------------------------------
# Forward
# ---------------------------------------------------------------------------

def reparam_head_forward(feature, w_fused, b_fused, eps=None, rsample=True,
                         *, block_b=512):
    """feature: [B, dim_in]; (w_fused, b_fused) from prepare_reparam_params;
    eps: [B, dim_out] (required iff rsample). Returns (z_mean, z_logvar, z)."""
    B, dim_in = feature.shape
    two_dout = w_fused.shape[1]
    dout = two_dout // 2
    compute_dtype = w_fused.dtype

    # Batch tile: multiple of 16 sublanes (bf16 packing), padded grid.
    tb = min(block_b, _round_up(B, 16))
    Bp = _round_up(B, tb)
    grid = (Bp // tb,)

    x = jnp.asarray(feature).astype(compute_dtype)
    if Bp != B:
        x = jnp.pad(x, ((0, Bp - B), (0, 0)))

    w_bytes = w_fused.size * jnp.dtype(compute_dtype).itemsize
    x_bytes = Bp * dim_in * jnp.dtype(compute_dtype).itemsize

    if rsample:
        if eps is None:
            raise ValueError("eps must be provided when rsample=True")
        e = jnp.asarray(eps, jnp.float32)
        if Bp != B:
            e = jnp.pad(e, ((0, Bp - B), (0, 0)))

        cost = pl.CostEstimate(
            flops=2 * Bp * dim_in * two_dout + 4 * Bp * dout,
            transcendentals=Bp * dout,
            bytes_accessed=x_bytes + w_bytes + two_dout * 4
                           + Bp * dout * 4 + Bp * 3 * dout * 4,
        )

        out = pl.pallas_call(
            _reparam_rsample_kernel,
            out_shape=jax.ShapeDtypeStruct((Bp, 3 * dout), jnp.float32),
            grid_spec=pltpu.PrefetchScalarGridSpec(
                num_scalar_prefetch=0,
                grid=grid,
                in_specs=[
                    pl.BlockSpec((tb, dim_in), lambda i: (i, 0)),        # feature tile
                    pl.BlockSpec((dim_in, two_dout), lambda i: (0, 0)),  # fused W^T
                    pl.BlockSpec((1, two_dout), lambda i: (0, 0)),       # fused bias
                    pl.BlockSpec((tb, dout), lambda i: (i, 0)),          # eps tile
                ],
                out_specs=pl.BlockSpec((tb, 3 * dout), lambda i: (i, 0)),
            ),
            compiler_params=pltpu.CompilerParams(
                dimension_semantics=("parallel",)),
            cost_estimate=cost,
        )(x, w_fused, b_fused, e)

        mean = out[:B, :dout]
        logvar = out[:B, dout:two_dout]
        z = out[:B, two_dout:]
        return mean, logvar, z

    else:
        cost = pl.CostEstimate(
            flops=2 * Bp * dim_in * two_dout,
            transcendentals=0,
            bytes_accessed=x_bytes + w_bytes + two_dout * 4 + Bp * two_dout * 4,
        )

        out = pl.pallas_call(
            _reparam_eval_kernel,
            out_shape=jax.ShapeDtypeStruct((Bp, two_dout), jnp.float32),
            grid_spec=pltpu.PrefetchScalarGridSpec(
                num_scalar_prefetch=0,
                grid=grid,
                in_specs=[
                    pl.BlockSpec((tb, dim_in), lambda i: (i, 0)),
                    pl.BlockSpec((dim_in, two_dout), lambda i: (0, 0)),
                    pl.BlockSpec((1, two_dout), lambda i: (0, 0)),
                ],
                out_specs=pl.BlockSpec((tb, two_dout), lambda i: (i, 0)),
            ),
            compiler_params=pltpu.CompilerParams(
                dimension_semantics=("parallel",)),
            cost_estimate=cost,
        )(x, w_fused, b_fused)

        mean = out[:B, :dout]
        logvar = out[:B, dout:]
        return mean, logvar, mean


# ---------------------------------------------------------------------------
# Test
# ---------------------------------------------------------------------------

def _torch_like_linear_init(key, dim_out, dim_in):
    """nn.Linear default init: U(-1/sqrt(fan_in), 1/sqrt(fan_in))."""
    kw, kb = jax.random.split(key)
    bound = 1.0 / jnp.sqrt(jnp.float32(dim_in))
    w = jax.random.uniform(kw, (dim_out, dim_in), jnp.float32, -bound, bound)
    b = jax.random.uniform(kb, (dim_out,), jnp.float32, -bound, bound)
    return w, b


if __name__ == "__main__":
    key = jax.random.PRNGKey(0)
    k_feat, k_mean, k_logvar, k_eps = jax.random.split(key, 4)

    B, dim_in, dim_out = 8, 32, 32

    feature = jax.random.normal(k_feat, (B, dim_in), jnp.float32)
    w_mean, b_mean = _torch_like_linear_init(k_mean, dim_out, dim_in)
    w_logvar, b_logvar = _torch_like_linear_init(k_logvar, dim_out, dim_in)
    eps = jax.random.normal(k_eps, (B, dim_out), jnp.float32)

    # Pack params once (init-time), then run the fused kernel.
    w_fused, b_fused = prepare_reparam_params(w_mean, b_mean, w_logvar, b_logvar)

    z_mean, z_logvar, z = reparam_head_forward(
        feature, w_fused, b_fused, eps=eps, rsample=True)
    jax.block_until_ready((z_mean, z_logvar, z))

    # Reference computed from the same bf16-rounded operands the kernel saw,
    # accumulated in f32 at highest precision.
    f_bf = feature.astype(jnp.bfloat16).astype(jnp.float32)
    wm_bf = w_mean.astype(jnp.bfloat16).astype(jnp.float32)
    wl_bf = w_logvar.astype(jnp.bfloat16).astype(jnp.float32)
    ref_mean = jnp.dot(f_bf, wm_bf.T, precision=jax.lax.Precision.HIGHEST) + b_mean
    ref_logvar = jnp.dot(f_bf, wl_bf.T, precision=jax.lax.Precision.HIGHEST) + b_logvar
    ref_z = ref_mean + eps * jnp.exp(0.5 * ref_logvar)

    assert jnp.allclose(z_mean, ref_mean, atol=1e-4, rtol=1e-4)
    assert jnp.allclose(z_logvar, ref_logvar, atol=1e-4, rtol=1e-4)
    assert jnp.allclose(z, ref_z, atol=1e-4, rtol=1e-4)

    # rsample=False path: no eps stream, z == mean.
    m_eval, lv_eval, z_eval = reparam_head_forward(
        feature, w_fused, b_fused, rsample=False)
    jax.block_until_ready((m_eval, lv_eval, z_eval))
    assert jnp.allclose(m_eval, ref_mean, atol=1e-4, rtol=1e-4)
    assert jnp.allclose(lv_eval, ref_logvar, atol=1e-4, rtol=1e-4)
    assert jnp.allclose(z_eval, m_eval)

    print("KERNEL_OK")
</pallas_src>

<mosaic_0001>
module attributes {stable_mosaic.version = 11 : i64} {
  func.func @_reparam_rsample_kernel(%arg0: i32, %arg1: memref<16x32xbf16, #tpu.memory_space<vmem>>, %arg2: memref<32x64xbf16, #tpu.memory_space<vmem>>, %arg3: memref<1x64xf32, #tpu.memory_space<vmem>>, %arg4: memref<16x32xf32, #tpu.memory_space<vmem>>, %arg5: memref<16x96xf32, #tpu.memory_space<vmem>>) attributes {dimension_semantics = [#tpu.dimension_semantics<parallel>], iteration_bounds = array<i64: 1>, scalar_prefetch = 0 : i64, scratch_operands = 0 : i64, tpu.core_type = #tpu.core_type<tc>, window_params = [{transform_indices = @transform_0, window_bounds = array<i64: 16, 32>}, {pipeline_mode = #tpu.pipeline_mode<synchronous>, transform_indices = @transform_1, window_bounds = array<i64: 32, 64>}, {pipeline_mode = #tpu.pipeline_mode<synchronous>, transform_indices = @transform_2, window_bounds = array<i64: 1, 64>}, {transform_indices = @transform_3, window_bounds = array<i64: 16, 32>}, {transform_indices = @transform_4, window_bounds = array<i64: 16, 96>}]} {
    %c0 = arith.constant 0 : index
    %c0_0 = arith.constant 0 : index
    %0 = vector.load %arg1[%c0, %c0_0] : memref<16x32xbf16, #tpu.memory_space<vmem>>, vector<16x32xbf16>
    %c0_1 = arith.constant 0 : index
    %c0_2 = arith.constant 0 : index
    %1 = vector.load %arg2[%c0_1, %c0_2] : memref<32x64xbf16, #tpu.memory_space<vmem>>, vector<32x64xbf16>
    %cst = arith.constant dense<0.000000e+00> : vector<16x64xf32>
    %2 = tpu.matmul %0, %1, %cst {dimension_numbers = #tpu.dot_dimension_numbers<[1], [0], [0], [1], [0, 0, 1, 1], [], []>} : vector<16x32xbf16>, vector<32x64xbf16>, vector<16x64xf32> -> vector<16x64xf32>
    %c0_3 = arith.constant 0 : index
    %c0_4 = arith.constant 0 : index
    %3 = vector.load %arg3[%c0_3, %c0_4] : memref<1x64xf32, #tpu.memory_space<vmem>>, vector<1x64xf32>
    %4 = vector.broadcast %3 : vector<1x64xf32> to vector<16x64xf32>
    %5 = arith.addf %2, %4 : vector<16x64xf32>
    %6 = vector.extract_strided_slice %5 {offsets = [0, 0], sizes = [16, 32], strides = [1, 1]} : vector<16x64xf32> to vector<16x32xf32>
    %7 = vector.extract_strided_slice %5 {offsets = [0, 32], sizes = [16, 32], strides = [1, 1]} : vector<16x64xf32> to vector<16x32xf32>
    %c0_5 = arith.constant 0 : index
    %c0_6 = arith.constant 0 : index
    %8 = vector.load %arg4[%c0_5, %c0_6] : memref<16x32xf32, #tpu.memory_space<vmem>>, vector<16x32xf32>
    %cst_7 = arith.constant 5.000000e-01 : f32
    %9 = vector.broadcast %cst_7 : f32 to vector<16x32xf32>
    %10 = arith.mulf %9, %7 : vector<16x32xf32>
    %11 = math.exp %10 : vector<16x32xf32>
    %12 = arith.mulf %8, %11 : vector<16x32xf32>
    %13 = arith.addf %6, %12 : vector<16x32xf32>
    %14 = tpu.concatenate %5, %13 in 1 : vector<16x64xf32>, vector<16x32xf32> -> vector<16x96xf32>
    %c0_8 = arith.constant 0 : index
    %c0_9 = arith.constant 0 : index
    %15 = vector.load %arg5[%c0_8, %c0_9] : memref<16x96xf32, #tpu.memory_space<vmem>>, vector<16x96xf32>
    tpu.vector_store %arg5[%c0_8, %c0_9], %14 {strides = array<i32>} : memref<16x96xf32, #tpu.memory_space<vmem>>, vector<16x96xf32>,
    return
  }
  func.func @transform_0(%arg0: i32) -> (i32, i32) {
    %c0_i32 = arith.constant 0 : i32
    %c0_i32_0 = arith.constant 0 : i32
    return %arg0, %c0_i32 : i32, i32
  }
  func.func @transform_1(%arg0: i32) -> (i32, i32) {
    %c0_i32 = arith.constant 0 : i32
    %c0_i32_0 = arith.constant 0 : i32
    %c0_i32_1 = arith.constant 0 : i32
    return %c0_i32, %c0_i32_0 : i32, i32
  }
  func.func @transform_2(%arg0: i32) -> (i32, i32) {
    %c0_i32 = arith.constant 0 : i32
    %c0_i32_0 = arith.constant 0 : i32
    %c0_i32_1 = arith.constant 0 : i32
    return %c0_i32, %c0_i32_0 : i32, i32
  }
  func.func @transform_3(%arg0: i32) -> (i32, i32) {
    %c0_i32 = arith.constant 0 : i32
    %c0_i32_0 = arith.constant 0 : i32
    return %arg0, %c0_i32 : i32, i32
  }
  func.func @transform_4(%arg0: i32) -> (i32, i32) {
    %c0_i32 = arith.constant 0 : i32
    %c0_i32_0 = arith.constant 0 : i32
    return %arg0, %c0_i32 : i32, i32
  }
}

</mosaic_0001>

<llo_original>
// kernel: tpu_custom_call.1
$region0: #{tpu_custom_call.1}
  #allocation0 [shape = 'u32[]', space=smem, size = 0x4, offset = 0x4, fixed_abs, tag = 'smem constant byte address 0x4 - core index']
  #allocation1 [shape = 'u32[144,128]{1,0:T(1,128)}', space=vmem, size = 0x12000, scoped, tag = 'internal scratch']
  %s0 = inlined_call_operand.hbm [shape: bf16[16,32], index: 0, kind: input, shape index: {}]
  %s1 = inlined_call_operand.hbm [shape: bf16[32,64], index: 1, kind: input, shape index: {}]
  %s2 = inlined_call_operand.vmem [shape: f32[1,64], index: 2, kind: input, shape index: {}]
  %s3 = inlined_call_operand.hbm [shape: f32[16,32], index: 3, kind: input, shape index: {}]
  %s4 = inlined_call_operand.hbm [shape: f32[16,96], index: 4, kind: output, shape index: {}]
  %s5 = sld [smem:[#allocation0]]
  $region38: #{tpu_custom_call.1} parent=0
    _
  %s7 = ssub.s32 1, %s5
  %s8 = scalar_select 0, %s7, %s5
  $region1: #{tpu_custom_call.1} parent=0
    #allocation2 [shape = 'u8[4096]{0}', space=vmem, size = 0x1000, scoped, tag = 'input window, operand 0, single buffered']
    #allocation3 [shape = 's32[1]{0}', space=sflag, size = 0x4, scoped, tag = 'scoped memory for tpu_custom_call.1']
    #allocation4 [shape = 's32[1]{0}', space=sflag, size = 0x4, scoped, tag = 'scoped memory for tpu_custom_call.1']
    #allocation5 [shape = 'u8[8192]{0}', space=vmem, size = 0x2000, scoped, tag = 'input window, operand 1, single buffered']
    #allocation6 [shape = 's32[1]{0}', space=sflag, size = 0x4, scoped, tag = 'scoped memory for tpu_custom_call.1']
    #allocation7 [shape = 'u8[8192]{0}', space=vmem, size = 0x2000, scoped, tag = 'input window, operand 3, single buffered']
    #allocation8 [shape = 'u8[8192]{0}', space=vmem, size = 0x2000, scoped, tag = 'output window, operand 0, single buffered']
    %9 = vsyncpa [#allocation3], 0
    %10 = vsyncpa [#allocation6], 0
    %11 = vsyncpa [#allocation4], 0
    // Predicated region
    $region2: #{tpu_custom_call.1} parent=1 // pred_check
      _
    $region3: #{tpu_custom_call.1} parent=1 // pred_check_branch
      %13 = sbr.rel (0) target = $region5
    $region4: #{tpu_custom_call.1} parent=1 // pred_region
      %s15 = ssub.s32 128, 128
      %16 = vsyncadd [#allocation3], %s15
      %s17 = sshll.u32 [#allocation2], 4
      %s18 = int_to_ptr.vmem [resolvable:$true] %s17
      %23 = dma.hbm_to_vmem [thread:$0]  %s0, 128, %s18, [#allocation3], 64, 64, 4
    $region5: #{tpu_custom_call.1} parent=1 // pred_fallthru
      _
    // Predicated region
    $region6: #{tpu_custom_call.1} parent=1 // pred_check
      _
    $region7: #{tpu_custom_call.1} parent=1 // pred_check_branch
      %25 = sbr.rel (0) target = $region9
    $region8: #{tpu_custom_call.1} parent=1 // pred_region
      %s27 = ssub.s32 256, 256
      %28 = vsyncadd [#allocation6], %s27
      %s29 = sshll.u32 [#allocation5], 4
      %s30 = int_to_ptr.vmem [resolvable:$true] %s29
      %35 = dma.hbm_to_vmem [thread:$0]  %s1, 256, %s30, [#allocation6], 64, 64, 4
    $region9: #{tpu_custom_call.1} parent=1 // pred_fallthru
      _
    // Predicated region
    $region10: #{tpu_custom_call.1} parent=1 // pred_check
      _
    $region11: #{tpu_custom_call.1} parent=1 // pred_check_branch
      %37 = sbr.rel (0) target = $region13
    $region12: #{tpu_custom_call.1} parent=1 // pred_region
      _
    $region13: #{tpu_custom_call.1} parent=1 // pred_fallthru
      _
    // Predicated region
    $region14: #{tpu_custom_call.1} parent=1 // pred_check
      _
    $region15: #{tpu_custom_call.1} parent=1 // pred_check_branch
      %39 = sbr.rel (0) target = $region17
    $region16: #{tpu_custom_call.1} parent=1 // pred_region
      %s41 = ssub.s32 256, 256
      %42 = vsyncadd [#allocation6], %s41
      %s43 = sshll.u32 [#allocation7], 4
      %s44 = int_to_ptr.vmem [resolvable:$true] %s43
      %49 = dma.hbm_to_vmem [thread:$0]  %s3, 256, %s44, [#allocation6], 128, 128, 8
    $region17: #{tpu_custom_call.1} parent=1 // pred_fallthru
      _
    // Predicated region
    $region18: #{tpu_custom_call.1} parent=1 // pred_check
      _
    $region19: #{tpu_custom_call.1} parent=1 // pred_check_branch
      %51 = sbr.rel (0) target = $region21
    $region20: #{tpu_custom_call.1} parent=1 // pred_region
      %52 = dma.done [#allocation3], 128
    $region21: #{tpu_custom_call.1} parent=1 // pred_fallthru
      _
    // Predicated region
    $region22: #{tpu_custom_call.1} parent=1 // pred_check
      _
    $region23: #{tpu_custom_call.1} parent=1 // pred_check_branch
      %54 = sbr.rel (0) target = $region25
    $region24: #{tpu_custom_call.1} parent=1 // pred_region
      %55 = dma.done [#allocation6], 256
    $region25: #{tpu_custom_call.1} parent=1 // pred_fallthru
      _
    // Predicated region
    $region26: #{tpu_custom_call.1} parent=1 // pred_check
      _
    $region27: #{tpu_custom_call.1} parent=1 // pred_check_branch
      %57 = sbr.rel (0) target = $region29
    $region28: #{tpu_custom_call.1} parent=1 // pred_region
      %58 = dma.done [#allocation6], 256
    $region29: #{tpu_custom_call.1} parent=1 // pred_fallthru
      _
    %v60 = vld [vmem:[#allocation2] sm:$0xf]
    %v61 = vld [vmem:[#allocation2 + $0x4] sm:$0xf]
    %v62 = vld [vmem:[#allocation5] sm:$0xf]
    %v63 = vld [vmem:[#allocation5 + $0x4] sm:$0xf]
    %v64 = vld [vmem:[#allocation5 + $0x8] sm:$0xf]
    %v65 = vld [vmem:[#allocation5 + $0xc] sm:$0xf]
    %v66 = vld [vmem:[%s2] sm:$0x1]
    %v68 = vlaneseq
    %v69 = vshrl.u32 %v68, 7
    %v70 = vsub.s32 0, %v69
    %v71 = vrot.slane %v66, %v70
    %v75 = vunpack.c.l.b16 %v60
    %v76 = vunpack.c.l.b16 %v61
    %v77 = vpack.c.b16 %v76, %v75
    %v82 = vunpack.c.l.b16 %v62
    %v83 = vunpack.c.l.b16 %v63
    %v84 = vunpack.c.l.b16 %v64
    %v85 = vunpack.c.l.b16 %v65
    %v86 = vpack.c.b16 %v83, %v82
    %v87 = vpack.c.b16 %v85, %v84
    %vm90 = vcmask 261120
    %v92 = vsel %vm90, %v77, 0
    %94 = vmatprep.subr.bf16.mxu0 0
    %95 = vmatpush1.bf16.msra.mxu0 %v86
    %96 = vmatprep.subr.bf16.mxu0 0
    %97 = vmatpush1.bf16.msra.mxu0 %v87
    %98 = vmatprep.subr.bf16.mxu0 0
    %99 = vmatpush1.bf16.msra.mxu0 0
    %100 = vmatprep.subr.bf16.mxu0 0
    %101 = vmatpush1.bf16.msra.mxu0 0
    %102 = vmatprep.subr.bf16.mxu0 0
    %103 = vmatpush1.bf16.msra.mxu0 0
    %104 = vmatprep.subr.bf16.mxu0 0
    %105 = vmatpush1.bf16.msra.mxu0 0
    %106 = vmatprep.subr.bf16.mxu0 0
    %107 = vmatpush1.bf16.msra.mxu0 0
    %108 = vmatprep.subr.bf16.mxu0 0
    %109 = vmatpush1.bf16.msra.mxu0 0
    %110 = vmatprep.subr.bf16.mxu0 0
    %111 = vmatpush1.bf16.msra.mxu0 0
    %112 = vmatprep.subr.bf16.mxu0 0
    %113 = vmatpush1.bf16.msra.mxu0 0
    %114 = vmatprep.subr.bf16.mxu0 0
    %115 = vmatpush1.bf16.msra.mxu0 0
    %116 = vmatprep.subr.bf16.mxu0 0
    %117 = vmatpush1.bf16.msra.mxu0 0
    %118 = vmatprep.subr.bf16.mxu0 0
    %119 = vmatpush1.bf16.msra.mxu0 0
    %120 = vmatprep.subr.bf16.mxu0 0
    %121 = vmatpush1.bf16.msra.mxu0 0
    %122 = vmatprep.subr.bf16.mxu0 0
    %123 = vmatpush1.bf16.msra.mxu0 0
    %124 = vmatprep.subr.bf16.mxu0 0
    %125 = vmatpush1.bf16.msra.mxu0 0
    %126 = vmatprep.mubr.bf16.mxu0 0
    %127 = vmatmul.mubr.bf16.gmra.mrb[0].mxu0 %v92
    %v128 = vpop.f32.mrb[0].mxu0
    %v129 = vadd.f32 %v71, %v128
    %v130 = vpop.f32.mrb[0].mxu0
    %v131 = vpop.f32.mrb[0].mxu0
    %v132 = vadd.f32 %v71, %v131
    %v133 = vpop.f32.mrb[0].mxu0
    %134 = vdwg.mxu0
    %v135 = vld [vmem:[#allocation7] sm:$0xff]
    %v136 = vld [vmem:[#allocation7 + $0x8] sm:$0xff]
    %v137 = vmul.f32 %v129, 0.5
    %v138 = vmul.f32 %v132, 0.5
    %v139 = vmul.f32 %v137, 1.442695
    %v140 = vpow.pop %v139
    %v141 = vmul.f32 %v138, 1.442695
    %v142 = vpow.pop %v141
    %145 = vrot.lane.b32.xlu0 %v140, 96
    %v146 = vpop.permute.xlu0 %145
    %147 = vrot.lane.b32.xlu0 %v142, 96
    %v148 = vpop.permute.xlu0 %147
    %v151 = vmul.f32 %v135, %v146
    %v152 = vmul.f32 %v136, %v148
    %v153 = vadd.f32 %v129, %v151
    %v154 = vadd.f32 %v132, %v152
    %157 = vrot.lane.b32.xlu0 %v153, 64
    %v158 = vpop.permute.xlu0 %157
    %159 = vrot.lane.b32.xlu0 %v154, 64
    %v160 = vpop.permute.xlu0 %159
    %vm163 = vcmask 523264
    %v164 = vsel %vm163, %v129, %v158
    %v165 = vsel %vm163, %v132, %v160
    %vm166 = vcmask 785408
    %167 = vst.msk [vmem:[#allocation8] sm:$0xff] %vm166, %v164
    %168 = vst.msk [vmem:[#allocation8 + $0x8] sm:$0xff] %vm166, %v165
    // Predicated region
    $region30: #{tpu_custom_call.1} parent=1 // pred_check
      _
    $region31: #{tpu_custom_call.1} parent=1 // pred_check_branch
      %170 = sbr.rel (0) target = $region33
    $region32: #{tpu_custom_call.1} parent=1 // pred_region
      %s172 = ssub.s32 256, 256
      %173 = vsyncadd [#allocation4], %s172
      %s174 = sshll.u32 [#allocation8], 4
      %s175 = int_to_ptr.vmem [resolvable:$true] %s174
      %180 = dma.vmem_to_hbm [thread:$0]  %s175, 256, %s4, [#allocation4], 128, 128, 8
    $region33: #{tpu_custom_call.1} parent=1 // pred_fallthru
      _
    // Predicated region
    $region34: #{tpu_custom_call.1} parent=1 // pred_check
      _
    $region35: #{tpu_custom_call.1} parent=1 // pred_check_branch
      %182 = sbr.rel (0) target = $region37
    $region36: #{tpu_custom_call.1} parent=1 // pred_region
      %183 = dma.done [#allocation4], 256
    $region37: #{tpu_custom_call.1} parent=1 // pred_fallthru
      _
    %184 = vsyncpa [#allocation3], 1
    %185 = vsyncpa [#allocation6], 1
    %186 = vsyncpa [#allocation4], 1

</llo_original>
